<compile_context>
chip_gen: v7x
topology: tpu7x:2x2x1
jax: 0.10.0
libtpu: 0.0.40
codegen_flags: <defaults>
</compile_context>

<pallas_src>
import functools

import jax
import jax.numpy as jnp
from jax.experimental import pallas as pl
from jax.experimental.pallas import tpu as pltpu


def _patch_embed_kernel(x_ref, w_ref, b_ref, o_ref):
    # x_ref: (tile_n, K) flattened-patch row tile (input dtype, e.g. bf16)
    # w_ref: (K, E)      projection matrix, resident across the grid
    # b_ref: (1, E)      bias in f32
    acc = jnp.dot(x_ref[...], w_ref[...], preferred_element_type=jnp.float32)
    o_ref[...] = (acc + b_ref[...]).astype(o_ref.dtype)


def patch_embed_matmul(patches, w, b, *, tile_n=512, out_dtype=None):
    """patches: (N, K), w: (K, E), b: (1, E) float32 -> (N, E) in out_dtype."""
    n, k = patches.shape
    k_w, e = w.shape
    assert k_w == k, (k_w, k)
    if out_dtype is None:
        out_dtype = patches.dtype

    # Row tile: clamp to the problem size, keep sublane (8) alignment.
    tile_n = int(min(tile_n, n))
    if tile_n > 8:
        tile_n -= tile_n % 8
    tile_n = max(tile_n, 1)
    grid = (pl.cdiv(n, tile_n),)

    in_bytes = patches.dtype.itemsize
    w_bytes = w.dtype.itemsize
    out_bytes = jnp.dtype(out_dtype).itemsize

    # Per-step VMEM footprint: double-buffered patch tile + output tile, plus
    # the resident weight/bias (2 buffers each by default).
    per_step = (2 * tile_n * k * in_bytes
                + 2 * tile_n * e * out_bytes
                + 2 * (k * e * w_bytes + e * 4))
    vmem_limit = int(min(64 * 1024 * 1024, max(32 * 1024 * 1024, 2 * per_step)))

    cost = pl.CostEstimate(
        flops=2 * n * k * e,
        transcendentals=0,
        bytes_accessed=n * k * in_bytes + k * e * w_bytes + e * 4 + n * e * out_bytes,
    )

    return pl.pallas_call(
        _patch_embed_kernel,
        out_shape=jax.ShapeDtypeStruct((n, e), out_dtype),
        grid_spec=pltpu.PrefetchScalarGridSpec(
            num_scalar_prefetch=0,
            grid=grid,
            in_specs=[
                pl.BlockSpec((tile_n, k), lambda i: (i, 0)),
                pl.BlockSpec((k, e), lambda i: (0, 0)),   # constant index: fetched once
                pl.BlockSpec((1, e), lambda i: (0, 0)),   # constant index: fetched once
            ],
            out_specs=pl.BlockSpec((tile_n, e), lambda i: (i, 0)),
        ),
        compiler_params=pltpu.CompilerParams(
            dimension_semantics=("parallel",),   # megacore: split row tiles across TCs
            vmem_limit_bytes=vmem_limit,
        ),
        cost_estimate=cost,
    )(patches, w, b)


def patch_embedding_forward(x, weight, bias, patch_size, *,
                            compute_dtype=None, out_dtype=None, tile_n=512):
    """Forward pass of PatchEmbedding.

    x:      (B, C, H, W)  NCHW, like PyTorch
    weight: (E, C, P, P)  PyTorch Conv2d weight layout
    bias:   (E,)
    returns (B, num_patches, E)
    """
    B, C, H, W = x.shape
    E = weight.shape[0]
    P = patch_size
    hp, wp = H // P, W // P
    num_patches = hp * wp
    K = C * P * P

    cdt = compute_dtype if compute_dtype is not None else x.dtype
    odt = out_dtype if out_dtype is not None else cdt

    # Cast BEFORE the patchify transpose so XLA fuses convert+transpose into a
    # single pass and the materialized patch matrix (and the kernel's input
    # DMA) is half-width when compute_dtype is bf16.
    xc = x.astype(cdt)
    xp = xc.reshape(B, C, hp, P, wp, P)
    xp = jnp.transpose(xp, (0, 2, 4, 1, 3, 5))            # (B, hp, wp, C, P, P)
    patches = xp.reshape(B * num_patches, K)              # (N, K)

    # Conv weight (E, C, P, P) -> matmul weight (K, E); tiny, cast is free.
    w_mat = weight.reshape(E, K).T.astype(cdt)
    b_mat = bias.reshape(1, E).astype(jnp.float32)         # bias added in f32

    out = patch_embed_matmul(patches, w_mat, b_mat, tile_n=tile_n, out_dtype=odt)
    return out.reshape(B, num_patches, E)


def _reference(x, weight, bias, P):
    """Plain-JAX strided conv, same semantics as the PyTorch module."""
    ref = jax.lax.conv_general_dilated(
        x, weight, window_strides=(P, P), padding="VALID",
        dimension_numbers=("NCHW", "OIHW", "NCHW"))
    ref = ref + bias[None, :, None, None]
    B, E = x.shape[0], weight.shape[0]
    n_p = (x.shape[2] // P) * (x.shape[3] // P)
    return ref.reshape(B, E, n_p).transpose(0, 2, 1)


if __name__ == "__main__":
    img_size = 16
    patch_size = 4
    in_channels = 4
    embed_dim = 32
    batch = 2

    key = jax.random.PRNGKey(0)
    kx, kw, kb = jax.random.split(key, 3)

    x = jax.random.normal(kx, (batch, in_channels, img_size, img_size),
                          dtype=jnp.float32)
    weight = jax.random.normal(
        kw, (embed_dim, in_channels, patch_size, patch_size),
        dtype=jnp.float32) * 0.02
    bias = jax.random.normal(kb, (embed_dim,), dtype=jnp.float32) * 0.02

    num_patches = (img_size // patch_size) ** 2

    # 1) f32 path: tight check against the conv reference.
    fwd_f32 = jax.jit(functools.partial(patch_embedding_forward,
                                        patch_size=patch_size))
    out = jax.block_until_ready(fwd_f32(x, weight, bias))
    ref = _reference(x, weight, bias, patch_size)
    assert out.shape == (batch, num_patches, embed_dim), out.shape
    assert jnp.allclose(out, ref, atol=1e-4, rtol=1e-4), "f32 mismatch vs reference"

    # 2) bf16 operands + bf16 output (MXU-native on v6e/v7x), f32 accumulation.
    fwd_bf16 = jax.jit(functools.partial(
        patch_embedding_forward, patch_size=patch_size,
        compute_dtype=jnp.bfloat16, out_dtype=jnp.bfloat16))
    out_bf16 = jax.block_until_ready(fwd_bf16(x, weight, bias))
    assert out_bf16.shape == (batch, num_patches, embed_dim)
    assert jnp.allclose(out_bf16.astype(jnp.float32), ref, atol=3e-2, rtol=3e-2), \
        "bf16 mismatch vs reference"

    # 3) Multi-step grid + ragged last row tile (exercises the pipelined path).
    x2 = jax.random.normal(kx, (batch, in_channels, 32, 32), dtype=jnp.float32)
    fwd_tiled = jax.jit(functools.partial(
        patch_embedding_forward, patch_size=patch_size, tile_n=40))
    out2 = jax.block_until_ready(fwd_tiled(x2, weight, bias))
    ref2 = _reference(x2, weight, bias, patch_size)
    assert out2.shape == (batch, (32 // patch_size) ** 2, embed_dim)
    assert jnp.allclose(out2, ref2, atol=1e-4, rtol=1e-4), "tiled mismatch vs reference"

    print("KERNEL_OK")
</pallas_src>

<mosaic_0001>
module attributes {stable_mosaic.version = 11 : i64} {
  func.func @_patch_embed_kernel(%arg0: i32, %arg1: memref<32x64xf32, #tpu.memory_space<vmem>>, %arg2: memref<64x32xf32, #tpu.memory_space<vmem>>, %arg3: memref<1x32xf32, #tpu.memory_space<vmem>>, %arg4: memref<32x32xf32, #tpu.memory_space<vmem>>) attributes {dimension_semantics = [#tpu.dimension_semantics<parallel>], iteration_bounds = array<i64: 1>, scalar_prefetch = 0 : i64, scratch_operands = 0 : i64, tpu.core_type = #tpu.core_type<tc>, window_params = [{transform_indices = @transform_0, window_bounds = array<i64: 32, 64>}, {pipeline_mode = #tpu.pipeline_mode<synchronous>, transform_indices = @transform_1, window_bounds = array<i64: 64, 32>}, {pipeline_mode = #tpu.pipeline_mode<synchronous>, transform_indices = @transform_2, window_bounds = array<i64: 1, 32>}, {transform_indices = @transform_3, window_bounds = array<i64: 32, 32>}]} {
    %c0 = arith.constant 0 : index
    %c0_0 = arith.constant 0 : index
    %0 = vector.load %arg1[%c0, %c0_0] : memref<32x64xf32, #tpu.memory_space<vmem>>, vector<32x64xf32>
    %c0_1 = arith.constant 0 : index
    %c0_2 = arith.constant 0 : index
    %1 = vector.load %arg2[%c0_1, %c0_2] : memref<64x32xf32, #tpu.memory_space<vmem>>, vector<64x32xf32>
    %cst = arith.constant dense<0.000000e+00> : vector<32x32xf32>
    %2 = tpu.matmul %0, %1, %cst {dimension_numbers = #tpu.dot_dimension_numbers<[1], [0], [0], [1], [0, 0, 1, 1], [], []>} : vector<32x64xf32>, vector<64x32xf32>, vector<32x32xf32> -> vector<32x32xf32>
    %c0_3 = arith.constant 0 : index
    %c0_4 = arith.constant 0 : index
    %3 = vector.load %arg3[%c0_3, %c0_4] : memref<1x32xf32, #tpu.memory_space<vmem>>, vector<1x32xf32>
    %4 = vector.broadcast %3 : vector<1x32xf32> to vector<32x32xf32>
    %5 = arith.addf %2, %4 : vector<32x32xf32>
    %c0_5 = arith.constant 0 : index
    %c0_6 = arith.constant 0 : index
    %6 = vector.load %arg4[%c0_5, %c0_6] : memref<32x32xf32, #tpu.memory_space<vmem>>, vector<32x32xf32>
    tpu.vector_store %arg4[%c0_5, %c0_6], %5 {strides = array<i32>} : memref<32x32xf32, #tpu.memory_space<vmem>>, vector<32x32xf32>,
    return
  }
  func.func @transform_0(%arg0: i32) -> (i32, i32) {
    %c0_i32 = arith.constant 0 : i32
    %c0_i32_0 = arith.constant 0 : i32
    return %arg0, %c0_i32 : i32, i32
  }
  func.func @transform_1(%arg0: i32) -> (i32, i32) {
    %c0_i32 = arith.constant 0 : i32
    %c0_i32_0 = arith.constant 0 : i32
    %c0_i32_1 = arith.constant 0 : i32
    return %c0_i32, %c0_i32_0 : i32, i32
  }
  func.func @transform_2(%arg0: i32) -> (i32, i32) {
    %c0_i32 = arith.constant 0 : i32
    %c0_i32_0 = arith.constant 0 : i32
    %c0_i32_1 = arith.constant 0 : i32
    return %c0_i32, %c0_i32_0 : i32, i32
  }
  func.func @transform_3(%arg0: i32) -> (i32, i32) {
    %c0_i32 = arith.constant 0 : i32
    %c0_i32_0 = arith.constant 0 : i32
    return %arg0, %c0_i32 : i32, i32
  }
}

</mosaic_0001>

<llo_original>
// kernel: patch_embedding_forward.1
$region0: #{patch_embedding_forward.1}
  #allocation0 [shape = 'u32[]', space=smem, size = 0x4, offset = 0x4, fixed_abs, tag = 'smem constant byte address 0x4 - core index']
  #allocation1 [shape = 'u32[144,128]{1,0:T(1,128)}', space=vmem, size = 0x12000, scoped, tag = 'internal scratch']
  %s0 = inlined_call_operand.vmem [shape: f32[32,64], index: 0, kind: input, shape index: {}]
  %s1 = inlined_call_operand.vmem [shape: f32[64,32], index: 1, kind: input, shape index: {}]
  %s2 = inlined_call_operand.vmem [shape: f32[1,32], index: 2, kind: input, shape index: {}]
  %s3 = inlined_call_operand.hbm [shape: f32[32,32], index: 3, kind: output, shape index: {}]
  %s4 = sld [smem:[#allocation0]]
  $region22: #{patch_embedding_forward.1} parent=0
    _
  %s6 = ssub.s32 1, %s4
  %s7 = scalar_select 0, %s6, %s4
  $region1: #{patch_embedding_forward.1} parent=0
    #allocation2 [shape = 'u8[16384]{0}', space=vmem, size = 0x4000, scoped, tag = 'output window, operand 0, single buffered']
    #allocation3 [shape = 's32[1]{0}', space=sflag, size = 0x4, scoped, tag = 'scoped memory for patch_embedding_forward.1']
    %8 = vsyncpa [#allocation3], 0
    // Predicated region
    $region2: #{patch_embedding_forward.1} parent=1 // pred_check
      _
    $region3: #{patch_embedding_forward.1} parent=1 // pred_check_branch
      %10 = sbr.rel (0) target = $region5
    $region4: #{patch_embedding_forward.1} parent=1 // pred_region
      _
    $region5: #{patch_embedding_forward.1} parent=1 // pred_fallthru
      _
    // Predicated region
    $region6: #{patch_embedding_forward.1} parent=1 // pred_check
      _
    $region7: #{patch_embedding_forward.1} parent=1 // pred_check_branch
      %12 = sbr.rel (0) target = $region9
    $region8: #{patch_embedding_forward.1} parent=1 // pred_region
      _
    $region9: #{patch_embedding_forward.1} parent=1 // pred_fallthru
      _
    // Predicated region
    $region10: #{patch_embedding_forward.1} parent=1 // pred_check
      _
    $region11: #{patch_embedding_forward.1} parent=1 // pred_check_branch
      %14 = sbr.rel (0) target = $region13
    $region12: #{patch_embedding_forward.1} parent=1 // pred_region
      _
    $region13: #{patch_embedding_forward.1} parent=1 // pred_fallthru
      _
    %v15 = vld [vmem:[%s0] sm:$0xff]
    %v16 = vld [vmem:[%s0 + $0x8] sm:$0xff]
    %v17 = vld [vmem:[%s0 + $0x10] sm:$0xff]
    %v18 = vld [vmem:[%s0 + $0x18] sm:$0xff]
    %v19 = vld [vmem:[%s1] sm:$0xff]
    %v20 = vld [vmem:[%s1 + $0x8] sm:$0xff]
    %v21 = vld [vmem:[%s1 + $0x10] sm:$0xff]
    %v22 = vld [vmem:[%s1 + $0x18] sm:$0xff]
    %v23 = vld [vmem:[%s1 + $0x20] sm:$0xff]
    %v24 = vld [vmem:[%s1 + $0x28] sm:$0xff]
    %v25 = vld [vmem:[%s1 + $0x30] sm:$0xff]
    %v26 = vld [vmem:[%s1 + $0x38] sm:$0xff]
    %v27 = vld [vmem:[%s2] sm:$0x1]
    %v29 = vlaneseq
    %v30 = vshrl.u32 %v29, 7
    %v31 = vsub.s32 0, %v30
    %v32 = vrot.slane %v27, %v31
    %vm34 = vcmask 523264
    %v36 = vsel %vm34, %v15, 0
    %v39 = vsel %vm34, %v16, 0
    %v42 = vsel %vm34, %v17, 0
    %v45 = vsel %vm34, %v18, 0
    %47 = vmatprep.subr.mxu0 0.0
    %48 = vmatpush1.msra.mxu0 %v19
    %49 = vmatprep.subr.mxu0 0.0
    %50 = vmatpush1.msra.mxu0 %v20
    %51 = vmatprep.subr.mxu0 0.0
    %52 = vmatpush1.msra.mxu0 %v21
    %53 = vmatprep.subr.mxu0 0.0
    %54 = vmatpush1.msra.mxu0 %v22
    %55 = vmatprep.subr.mxu0 0.0
    %56 = vmatpush1.msra.mxu0 %v23
    %57 = vmatprep.subr.mxu0 0.0
    %58 = vmatpush1.msra.mxu0 %v24
    %59 = vmatprep.subr.mxu0 0.0
    %60 = vmatpush1.msra.mxu0 %v25
    %61 = vmatprep.subr.mxu0 0.0
    %62 = vmatpush1.msra.mxu0 %v26
    %63 = vmatprep.subr.mxu0 0.0
    %64 = vmatpush1.msra.mxu0 0.0
    %65 = vmatprep.subr.mxu0 0.0
    %66 = vmatpush1.msra.mxu0 0.0
    %67 = vmatprep.subr.mxu0 0.0
    %68 = vmatpush1.msra.mxu0 0.0
    %69 = vmatprep.subr.mxu0 0.0
    %70 = vmatpush1.msra.mxu0 0.0
    %71 = vmatprep.subr.mxu0 0.0
    %72 = vmatpush1.msra.mxu0 0.0
    %73 = vmatprep.subr.mxu0 0.0
    %74 = vmatpush1.msra.mxu0 0.0
    %75 = vmatprep.subr.mxu0 0.0
    %76 = vmatpush1.msra.mxu0 0.0
    %77 = vmatprep.subr.mxu0 0.0
    %78 = vmatpush1.msra.mxu0 0.0
    %79 = vmatprep.subr.mxu0 0.0
    %80 = vmatpush1.msra.mxu0 0.0
    %81 = vmatprep.subr.mxu0 0.0
    %82 = vmatpush1.msra.mxu0 0.0
    %83 = vmatprep.subr.mxu0 0.0
    %84 = vmatpush1.msra.mxu0 0.0
    %85 = vmatprep.subr.mxu0 0.0
    %86 = vmatpush1.msra.mxu0 0.0
    %87 = vmatprep.subr.mxu0 0.0
    %88 = vmatpush1.msra.mxu0 0.0
    %89 = vmatprep.subr.mxu0 0.0
    %90 = vmatpush1.msra.mxu0 0.0
    %91 = vmatprep.subr.mxu0 0.0
    %92 = vmatpush1.msra.mxu0 0.0
    %93 = vmatprep.subr.mxu0 0.0
    %94 = vmatpush1.msra.mxu0 0.0
    %95 = vmatprep.subr.mxu0 0.0
    %96 = vmatpush1.msra.mxu0 0.0
    %97 = vmatprep.subr.mxu0 0.0
    %98 = vmatpush1.msra.mxu0 0.0
    %99 = vmatprep.subr.mxu0 0.0
    %100 = vmatpush1.msra.mxu0 0.0
    %101 = vmatprep.subr.mxu0 0.0
    %102 = vmatpush1.msra.mxu0 0.0
    %103 = vmatprep.subr.mxu0 0.0
    %104 = vmatpush1.msra.mxu0 0.0
    %105 = vmatprep.subr.mxu0 0.0
    %106 = vmatpush1.msra.mxu0 0.0
    %107 = vmatprep.subr.mxu0 0.0
    %108 = vmatpush1.msra.mxu0 0.0
    %109 = vmatprep.subr.mxu0 0.0
    %110 = vmatpush1.msra.mxu0 0.0
    %111 = vmatprep.mubr.f32.mxu0 0.0
    %112 = vmatmul.mubr.f32.gmra.mrb[0].mxu0 %v36
    %v113 = vpop.f32.mrb[0].mxu0
    %v114 = vadd.f32 %v32, %v113
    %v115 = vpop.f32.mrb[0].mxu0
    %116 = vmatprep.mubr.f32.mxu0 0.0
    %117 = vmatmul.mubr.f32.gmra.mrb[0].mxu0 %v39
    %v118 = vpop.f32.mrb[0].mxu0
    %v119 = vadd.f32 %v32, %v118
    %v120 = vpop.f32.mrb[0].mxu0
    %121 = vmatprep.mubr.f32.mxu0 0.0
    %122 = vmatmul.mubr.f32.gmra.mrb[0].mxu0 %v42
    %v123 = vpop.f32.mrb[0].mxu0
    %v124 = vadd.f32 %v32, %v123
    %v125 = vpop.f32.mrb[0].mxu0
    %126 = vmatprep.mubr.f32.mxu0 0.0
    %127 = vmatmul.mubr.f32.gmra.mrb[0].mxu0 %v45
    %v128 = vpop.f32.mrb[0].mxu0
    %v129 = vadd.f32 %v32, %v128
    %v130 = vpop.f32.mrb[0].mxu0
    %131 = vdwg.mxu0
    %vm132 = vcmask 261120
    %133 = vst.msk [vmem:[#allocation2] sm:$0xff] %vm132, %v114
    %134 = vst.msk [vmem:[#allocation2 + $0x8] sm:$0xff] %vm132, %v119
    %135 = vst.msk [vmem:[#allocation2 + $0x10] sm:$0xff] %vm132, %v124
    %136 = vst.msk [vmem:[#allocation2 + $0x18] sm:$0xff] %vm132, %v129
    // Predicated region
    $region14: #{patch_embedding_forward.1} parent=1 // pred_check
      _
    $region15: #{patch_embedding_forward.1} parent=1 // pred_check_branch
      %138 = sbr.rel (0) target = $region17
    $region16: #{patch_embedding_forward.1} parent=1 // pred_region
      %s140 = ssub.s32 512, 512
      %141 = vsyncadd [#allocation3], %s140
      %s142 = sshll.u32 [#allocation2], 4
      %s143 = int_to_ptr.vmem [resolvable:$true] %s142
      %148 = dma.vmem_to_hbm [thread:$0]  %s143, 512, %s3, [#allocation3], 128, 128, 8
    $region17: #{patch_embedding_forward.1} parent=1 // pred_fallthru
      _
    // Predicated region
    $region18: #{patch_embedding_forward.1} parent=1 // pred_check
      _
    $region19: #{patch_embedding_forward.1} parent=1 // pred_check_branch
      %150 = sbr.rel (0) target = $region21
    $region20: #{patch_embedding_forward.1} parent=1 // pred_region
      %151 = dma.done [#allocation3], 512
    $region21: #{patch_embedding_forward.1} parent=1 // pred_fallthru
      _
    %152 = vsyncpa [#allocation3], 1

</llo_original>
